<compile_context>
chip_gen: v7x
topology: tpu7x:2x2x1
jax: 0.10.0
libtpu: 0.0.40
codegen_flags: <defaults>
</compile_context>

<pallas_src>
import functools

import jax
import jax.numpy as jnp
from jax import lax
from jax.experimental import pallas as pl
from jax.experimental.pallas import tpu as pltpu


def _round_up(x, m):
    return ((x + m - 1) // m) * m


def _device_kind():
    try:
        return jax.devices()[0].device_kind.lower()
    except Exception:  # pragma: no cover - heuristics only
        return ""


def _is_v5e(kind):
    return ("v5 lite" in kind) or ("v5e" in kind) or ("v5litepod" in kind)


# ---------------------------------------------------------------------------
# Path 1: small tables fully resident in VMEM, one-hot matmul gather (MXU).
# ---------------------------------------------------------------------------
def _onehot_embed_kernel(ids_ref, orig_ref, new_ref, out_ref, *, precision):
    # ids_ref  : (T, 1)   int32     -- sublane-major ids (no lane->sublane relayout)
    # orig_ref : (V_o, H) table dt  -- original table, VMEM resident (Buffered(1))
    # new_ref  : (V_n, H) table dt  -- new table, VMEM resident (Buffered(1))
    # out_ref  : (T, H)   table dt  -- output embeddings for this tile
    ids = ids_ref[...]                                   # (T, 1)
    T = ids.shape[0]
    V_o = orig_ref.shape[0]
    V_n = new_ref.shape[0]

    iota_o = lax.broadcasted_iota(jnp.int32, (T, V_o), 1)
    iota_n = lax.broadcasted_iota(jnp.int32, (T, V_n), 1)
    # 0/1 selectors in the table dtype (exact in bf16 -> single MXU pass for
    # bf16 checkpoints); f32 tables use precision=HIGHEST to keep the row
    # selection exact.  Accumulate in f32 on the MXU.
    oh_o = (ids == iota_o).astype(orig_ref.dtype)         # (T, V_o)
    oh_n = ((ids - V_o) == iota_n).astype(new_ref.dtype)  # (T, V_n)

    acc = jnp.dot(oh_o, orig_ref[...], precision=precision,
                  preferred_element_type=jnp.float32)
    acc = acc + jnp.dot(oh_n, new_ref[...], precision=precision,
                        preferred_element_type=jnp.float32)
    out_ref[...] = acc.astype(out_ref.dtype)


# ---------------------------------------------------------------------------
# Path 2: tables stay in HBM, per-row DMA gather driven by per-tile SMEM ids.
# ---------------------------------------------------------------------------
def _gather_embed_kernel(ids_ref, orig_hbm, new_hbm, out_ref, sem):
    # ids_ref  : SMEM (1, T) int32 -- this tile's ids only (no whole-array prefetch)
    # orig_hbm : HBM  (V_o, H)     -- original table (memory_space=pl.ANY)
    # new_hbm  : HBM  (V_n, H)     -- new table (memory_space=pl.ANY)
    # out_ref  : VMEM (T, H)       -- output tile (DMA destination)
    # sem      : scalar DMA semaphore
    T = out_ref.shape[0]
    V_o = orig_hbm.shape[0]

    # Issue all row DMAs first; every SMEM id read happens before any .wait().
    def issue(t, carry):
        row = ids_ref[0, t]

        @pl.when(row < V_o)
        def _():
            pltpu.make_async_copy(
                orig_hbm.at[pl.ds(row, 1), :],
                out_ref.at[pl.ds(t, 1), :],
                sem,
            ).start()

        @pl.when(row >= V_o)
        def _():
            pltpu.make_async_copy(
                new_hbm.at[pl.ds(row - V_o, 1), :],
                out_ref.at[pl.ds(t, 1), :],
                sem,
            ).start()

        return carry

    lax.fori_loop(0, T, issue, 0, unroll=8)

    # Drain.  The wait amount depends only on the copy shape/dtype, which is
    # identical for every issued row (both tables share dtype and H), so a
    # fixed source slice is fine here.
    def drain(t, carry):
        pltpu.make_async_copy(
            orig_hbm.at[pl.ds(0, 1), :],
            out_ref.at[pl.ds(t, 1), :],
            sem,
        ).wait()
        return carry

    lax.fori_loop(0, T, drain, 0, unroll=8)


# ---------------------------------------------------------------------------
# Wrapper
# ---------------------------------------------------------------------------
def extended_embedding(input_ids, orig_table, new_table, *,
                       method="auto",
                       onehot_token_tile=None,
                       gather_token_tile=256):
    """input_ids: int [B, S]; returns [B, S, H] in the tables' dtype.

    Out-of-range ids are clipped to [0, V_o+V_n-1] (PyTorch would raise).
    """
    V_o, H = orig_table.shape
    V_n, H2 = new_table.shape
    assert H == H2, "hidden size mismatch between tables"
    if new_table.dtype != orig_table.dtype:
        new_table = new_table.astype(orig_table.dtype)
    out_dtype = orig_table.dtype
    itemsize = jnp.dtype(out_dtype).itemsize
    V = V_o + V_n
    table_bytes = V * H * itemsize

    B, S = input_ids.shape
    tokens = B * S
    ids_flat = jnp.clip(input_ids.reshape(-1).astype(jnp.int32), 0, V - 1)

    kind = _device_kind()
    v5e = _is_v5e(kind)

    if method == "auto":
        # v5e MXU is ~4.6x slower (197 vs 918 TF/s) -> smaller one-hot budget.
        thr = (2 if v5e else 8) * 1024 * 1024
        # Also cap V so the per-tile (T, V) selector stays small.
        method = "onehot" if (table_bytes <= thr and V <= 8192) else "gather"

    if method == "onehot":
        # 256-row tiles fill the 256x256 MXU on v6e/v7x; 128 on v5e (4x128x128).
        if onehot_token_tile is None:
            onehot_token_tile = 128 if v5e else 256
        tile = min(onehot_token_tile, max(8, _round_up(tokens, 8)))
        num_tiles = pl.cdiv(tokens, tile)
        padded = num_tiles * tile
        ids_p = jnp.pad(ids_flat, (0, padded - tokens)) if padded != tokens else ids_flat
        ids_col = ids_p.reshape(padded, 1)          # sublane-major id layout

        # Tables single-buffered (Buffered(1)); output tile double-buffered by
        # the pipeline; selector temporaries counted conservatively.
        need = (table_bytes
                + 2 * tile * H * itemsize
                + 2 * tile * V * 4
                + (4 << 20))
        vmem_limit = int(min(48 << 20, max(need, 16 << 20)))  # 48 MiB cap: v7x-safe

        precision = (lax.Precision.HIGHEST
                     if jnp.dtype(out_dtype) == jnp.float32 else None)
        kernel = functools.partial(_onehot_embed_kernel, precision=precision)

        out_flat = pl.pallas_call(
            kernel,
            out_shape=jax.ShapeDtypeStruct((padded, H), out_dtype),
            grid_spec=pltpu.PrefetchScalarGridSpec(
                num_scalar_prefetch=0,
                grid=(num_tiles,),
                in_specs=[
                    pl.BlockSpec((tile, 1), lambda i: (i, 0)),          # ids tile
                    pl.BlockSpec((V_o, H), lambda i: (0, 0),
                                 pipeline_mode=pl.Buffered(buffer_count=1)),
                    pl.BlockSpec((V_n, H), lambda i: (0, 0),
                                 pipeline_mode=pl.Buffered(buffer_count=1)),
                ],
                out_specs=pl.BlockSpec((tile, H), lambda i: (i, 0)),
            ),
            compiler_params=pltpu.CompilerParams(
                dimension_semantics=("parallel",),
                vmem_limit_bytes=vmem_limit),
        )(ids_col, orig_table, new_table)

    else:  # "gather": tables left in HBM, per-tile ids in SMEM, row-DMA gather.
        tile = min(gather_token_tile, max(8, _round_up(tokens, 8)))
        num_tiles = pl.cdiv(tokens, tile)
        padded = num_tiles * tile
        ids_p = jnp.pad(ids_flat, (0, padded - tokens)) if padded != tokens else ids_flat
        ids2 = ids_p.reshape(num_tiles, tile)

        need = 2 * tile * H * itemsize + (4 << 20)   # double-buffered out tile + slack
        vmem_limit = int(min(48 << 20, max(need, 16 << 20)))

        out_flat = pl.pallas_call(
            _gather_embed_kernel,
            out_shape=jax.ShapeDtypeStruct((padded, H), out_dtype),
            grid_spec=pltpu.PrefetchScalarGridSpec(
                num_scalar_prefetch=0,
                grid=(num_tiles,),
                in_specs=[
                    pl.BlockSpec((1, tile), lambda i: (i, 0),
                                 memory_space=pltpu.MemorySpace.SMEM),  # ids tile
                    pl.BlockSpec(memory_space=pl.ANY),                  # orig table (HBM)
                    pl.BlockSpec(memory_space=pl.ANY),                  # new table (HBM)
                ],
                out_specs=pl.BlockSpec((tile, H), lambda i: (i, 0)),
                scratch_shapes=[pltpu.SemaphoreType.DMA(())],
            ),
            compiler_params=pltpu.CompilerParams(
                dimension_semantics=("parallel",),   # independent tiles -> both TCs on v7x
                vmem_limit_bytes=vmem_limit),
        )(ids2, orig_table, new_table)

    return out_flat[:tokens].reshape(B, S, H)


if __name__ == "__main__":
    key = jax.random.PRNGKey(0)
    k_ids, k_orig, k_new = jax.random.split(key, 3)

    # Small demo shapes; H=128 keeps the output stores lane-dense.
    B, S, H = 2, 8, 128
    V_ORIG, V_NEW = 16, 4

    orig_table = jax.random.normal(k_orig, (V_ORIG, H), dtype=jnp.bfloat16)
    new_table = jax.random.normal(k_new, (V_NEW, H), dtype=jnp.bfloat16)
    input_ids = jax.random.randint(k_ids, (B, S), 0, V_ORIG + V_NEW,
                                   dtype=jnp.int32)

    # Small-table (one-hot / MXU) path.
    out_onehot = jax.block_until_ready(
        extended_embedding(input_ids, orig_table, new_table, method="onehot"))
    # Large-table (HBM row-DMA gather) path, exercised on the same data.
    out_gather = jax.block_until_ready(
        extended_embedding(input_ids, orig_table, new_table, method="gather"))

    # Pure-JAX reference of the PyTorch semantics.
    is_new = input_ids >= V_ORIG
    ref = jnp.where(
        is_new[..., None],
        new_table[jnp.clip(input_ids - V_ORIG, 0, V_NEW - 1)],
        orig_table[jnp.clip(input_ids, 0, V_ORIG - 1)],
    )

    assert out_onehot.shape == (B, S, H) and out_onehot.dtype == orig_table.dtype
    assert out_gather.shape == (B, S, H) and out_gather.dtype == orig_table.dtype
    assert jnp.allclose(out_onehot.astype(jnp.float32), ref.astype(jnp.float32),
                        atol=1e-6, rtol=1e-6)
    assert jnp.allclose(out_gather.astype(jnp.float32), ref.astype(jnp.float32),
                        atol=1e-6, rtol=1e-6)
    print("KERNEL_OK")
</pallas_src>

<mosaic_0001>
module attributes {stable_mosaic.version = 11 : i64} {
  func.func @_onehot_embed_kernel(%arg0: i32, %arg1: memref<16x1xi32, #tpu.memory_space<vmem>>, %arg2: memref<16x128xbf16, #tpu.memory_space<vmem>>, %arg3: memref<4x128xbf16, #tpu.memory_space<vmem>>, %arg4: memref<16x128xbf16, #tpu.memory_space<vmem>>) attributes {dimension_semantics = [#tpu.dimension_semantics<parallel>], iteration_bounds = array<i64: 1>, scalar_prefetch = 0 : i64, scratch_operands = 0 : i64, tpu.core_type = #tpu.core_type<tc>, window_params = [{transform_indices = @transform_0, window_bounds = array<i64: 16, 1>}, {pipeline_mode = #tpu.pipeline_mode<synchronous>, transform_indices = @transform_1, window_bounds = array<i64: 16, 128>}, {pipeline_mode = #tpu.pipeline_mode<synchronous>, transform_indices = @transform_2, window_bounds = array<i64: 4, 128>}, {transform_indices = @transform_3, window_bounds = array<i64: 16, 128>}]} {
    %c0 = arith.constant 0 : index
    %c0_0 = arith.constant 0 : index
    %0 = vector.load %arg1[%c0, %c0_0] : memref<16x1xi32, #tpu.memory_space<vmem>>, vector<16x1xi32>
    %1 = tpu.iota {dimensions = array<i32: 1>} : vector<16x16xi32>
    %2 = tpu.iota {dimensions = array<i32: 1>} : vector<16x4xi32>
    %3 = vector.broadcast %0 : vector<16x1xi32> to vector<16x16xi32>
    %4 = arith.cmpi eq, %3, %1 : vector<16x16xi32>
    %5 = arith.extui %4 : vector<16x16xi1> to vector<16x16xi32>
    %6 = arith.sitofp %5 : vector<16x16xi32> to vector<16x16xf32>
    %7 = arith.truncf %6 : vector<16x16xf32> to vector<16x16xbf16>
    %c16_i32 = arith.constant 16 : i32
    %8 = vector.broadcast %c16_i32 : i32 to vector<16x1xi32>
    %9 = arith.subi %0, %8 : vector<16x1xi32>
    %10 = vector.broadcast %9 : vector<16x1xi32> to vector<16x4xi32>
    %11 = arith.cmpi eq, %10, %2 : vector<16x4xi32>
    %12 = arith.extui %11 : vector<16x4xi1> to vector<16x4xi32>
    %13 = arith.sitofp %12 : vector<16x4xi32> to vector<16x4xf32>
    %14 = arith.truncf %13 : vector<16x4xf32> to vector<16x4xbf16>
    %c0_1 = arith.constant 0 : index
    %c0_2 = arith.constant 0 : index
    %15 = vector.load %arg2[%c0_1, %c0_2] : memref<16x128xbf16, #tpu.memory_space<vmem>>, vector<16x128xbf16>
    %cst = arith.constant dense<0.000000e+00> : vector<16x128xf32>
    %16 = tpu.matmul %7, %15, %cst {dimension_numbers = #tpu.dot_dimension_numbers<[1], [0], [0], [1], [0, 0, 1, 1], [], []>} : vector<16x16xbf16>, vector<16x128xbf16>, vector<16x128xf32> -> vector<16x128xf32>
    %c0_3 = arith.constant 0 : index
    %c0_4 = arith.constant 0 : index
    %17 = vector.load %arg3[%c0_3, %c0_4] : memref<4x128xbf16, #tpu.memory_space<vmem>>, vector<4x128xbf16>
    %cst_5 = arith.constant dense<0.000000e+00> : vector<16x128xf32>
    %18 = tpu.matmul %14, %17, %cst_5 {dimension_numbers = #tpu.dot_dimension_numbers<[1], [0], [0], [1], [0, 0, 1, 1], [], []>} : vector<16x4xbf16>, vector<4x128xbf16>, vector<16x128xf32> -> vector<16x128xf32>
    %19 = arith.addf %16, %18 : vector<16x128xf32>
    %20 = arith.truncf %19 : vector<16x128xf32> to vector<16x128xbf16>
    %c0_6 = arith.constant 0 : index
    %c0_7 = arith.constant 0 : index
    %21 = vector.load %arg4[%c0_6, %c0_7] : memref<16x128xbf16, #tpu.memory_space<vmem>>, vector<16x128xbf16>
    tpu.vector_store %arg4[%c0_6, %c0_7], %20 {strides = array<i32>} : memref<16x128xbf16, #tpu.memory_space<vmem>>, vector<16x128xbf16>,
    return
  }
  func.func @transform_0(%arg0: i32) -> (i32, i32) {
    %c0_i32 = arith.constant 0 : i32
    %c0_i32_0 = arith.constant 0 : i32
    return %arg0, %c0_i32 : i32, i32
  }
  func.func @transform_1(%arg0: i32) -> (i32, i32) {
    %c0_i32 = arith.constant 0 : i32
    %c0_i32_0 = arith.constant 0 : i32
    %c0_i32_1 = arith.constant 0 : i32
    return %c0_i32, %c0_i32_0 : i32, i32
  }
  func.func @transform_2(%arg0: i32) -> (i32, i32) {
    %c0_i32 = arith.constant 0 : i32
    %c0_i32_0 = arith.constant 0 : i32
    %c0_i32_1 = arith.constant 0 : i32
    return %c0_i32, %c0_i32_0 : i32, i32
  }
  func.func @transform_3(%arg0: i32) -> (i32, i32) {
    %c0_i32 = arith.constant 0 : i32
    %c0_i32_0 = arith.constant 0 : i32
    return %arg0, %c0_i32 : i32, i32
  }
}

</mosaic_0001>

<llo_original>
// kernel: tpu_custom_call.1
$region0: #{tpu_custom_call.1}
  #allocation0 [shape = 'u32[]', space=smem, size = 0x4, offset = 0x4, fixed_abs, tag = 'smem constant byte address 0x4 - core index']
  #allocation1 [shape = 'u32[144,128]{1,0:T(1,128)}', space=vmem, size = 0x12000, scoped, tag = 'internal scratch']
  %s0 = inlined_call_operand.vmem [shape: s32[16,1], index: 0, kind: input, shape index: {}]
  %s1 = inlined_call_operand.vmem [shape: bf16[16,128], index: 1, kind: input, shape index: {}]
  %s2 = inlined_call_operand.vmem [shape: bf16[4,128], index: 2, kind: input, shape index: {}]
  %s3 = inlined_call_operand.hbm [shape: bf16[16,128], index: 3, kind: output, shape index: {}]
  %s4 = sld [smem:[#allocation0]]
  $region22: #{tpu_custom_call.1} parent=0
    _
  %s6 = ssub.s32 1, %s4
  %s7 = scalar_select 0, %s6, %s4
  $region1: #{tpu_custom_call.1} parent=0
    #allocation2 [shape = 'u8[4096]{0}', space=vmem, size = 0x1000, scoped, tag = 'output window, operand 0, single buffered']
    #allocation3 [shape = 's32[1]{0}', space=sflag, size = 0x4, scoped, tag = 'scoped memory for tpu_custom_call.1']
    %8 = vsyncpa [#allocation3], 0
    // Predicated region
    $region2: #{tpu_custom_call.1} parent=1 // pred_check
      _
    $region3: #{tpu_custom_call.1} parent=1 // pred_check_branch
      %10 = sbr.rel (0) target = $region5
    $region4: #{tpu_custom_call.1} parent=1 // pred_region
      _
    $region5: #{tpu_custom_call.1} parent=1 // pred_fallthru
      _
    // Predicated region
    $region6: #{tpu_custom_call.1} parent=1 // pred_check
      _
    $region7: #{tpu_custom_call.1} parent=1 // pred_check_branch
      %12 = sbr.rel (0) target = $region9
    $region8: #{tpu_custom_call.1} parent=1 // pred_region
      _
    $region9: #{tpu_custom_call.1} parent=1 // pred_fallthru
      _
    // Predicated region
    $region10: #{tpu_custom_call.1} parent=1 // pred_check
      _
    $region11: #{tpu_custom_call.1} parent=1 // pred_check_branch
      %14 = sbr.rel (0) target = $region13
    $region12: #{tpu_custom_call.1} parent=1 // pred_region
      _
    $region13: #{tpu_custom_call.1} parent=1 // pred_fallthru
      _
    %v16 = vld [vmem:[%s0] sm:$0xff]
    %v17 = vld [vmem:[%s0 + $0x8] sm:$0xff]
    %v18 = vlaneseq
    %v19 = vand.u32 %v18, 127
    %20 = vset.pattern.permute.xlu0 0
    %21 = vperm.xlu0 %20, %v16
    %v22 = vpop.permute.xlu0 %21
    %23 = vset.pattern.permute.xlu0 0
    %24 = vperm.xlu0 %23, %v17
    %v25 = vpop.permute.xlu0 %24
    %vm26 = vcmp.eq.s32.totalorder %v22, %v19
    %vm27 = vcmp.eq.s32.totalorder %v25, %v19
    %v28 = vsel %vm26, 1, 0
    %v29 = vsel %vm27, 1, 0
    %v30 = vcvt.s32.f32 %v28
    %v31 = vcvt.s32.f32 %v29
    %v32 = vpack.c.bf16 %v31, %v30
    %v33 = vsub.s32 %v16, 16
    %v34 = vsub.s32 %v17, 16
    %35 = vset.pattern.permute.xlu0 0
    %36 = vperm.xlu0 %35, %v33
    %v37 = vpop.permute.xlu0 %36
    %38 = vset.pattern.permute.xlu0 0
    %39 = vperm.xlu0 %38, %v34
    %v40 = vpop.permute.xlu0 %39
    %vm41 = vcmp.eq.s32.totalorder %v37, %v19
    %vm42 = vcmp.eq.s32.totalorder %v40, %v19
    %v43 = vsel %vm41, 1, 0
    %v44 = vsel %vm42, 1, 0
    %v45 = vcvt.s32.f32 %v43
    %v46 = vcvt.s32.f32 %v44
    %v47 = vpack.c.bf16 %v46, %v45
    %v48 = vld [vmem:[%s1] sm:$0xf]
    %v49 = vld [vmem:[%s1 + $0x4] sm:$0xf]
    %v50 = vld [vmem:[%s2] sm:$0x3]
    %vm51 = vcmask 31744
    %v53 = vsel %vm51, %v47, 0
    %vm55 = vcmask 1041408
    %v57 = vsel %vm55, %v50, 0
    %59 = vmatprep.subr.bf16.mxu0 0
    %60 = vmatpush1.bf16.msra.mxu0 %v57
    %61 = vmatprep.subr.bf16.mxu0 0
    %62 = vmatpush1.bf16.msra.mxu0 0
    %63 = vmatprep.subr.bf16.mxu0 0
    %64 = vmatpush1.bf16.msra.mxu0 0
    %65 = vmatprep.subr.bf16.mxu0 0
    %66 = vmatpush1.bf16.msra.mxu0 0
    %67 = vmatprep.subr.bf16.mxu0 0
    %68 = vmatpush1.bf16.msra.mxu0 0
    %69 = vmatprep.subr.bf16.mxu0 0
    %70 = vmatpush1.bf16.msra.mxu0 0
    %71 = vmatprep.subr.bf16.mxu0 0
    %72 = vmatpush1.bf16.msra.mxu0 0
    %73 = vmatprep.subr.bf16.mxu0 0
    %74 = vmatpush1.bf16.msra.mxu0 0
    %75 = vmatprep.subr.bf16.mxu0 0
    %76 = vmatpush1.bf16.msra.mxu0 0
    %77 = vmatprep.subr.bf16.mxu0 0
    %78 = vmatpush1.bf16.msra.mxu0 0
    %79 = vmatprep.subr.bf16.mxu0 0
    %80 = vmatpush1.bf16.msra.mxu0 0
    %81 = vmatprep.subr.bf16.mxu0 0
    %82 = vmatpush1.bf16.msra.mxu0 0
    %83 = vmatprep.subr.bf16.mxu0 0
    %84 = vmatpush1.bf16.msra.mxu0 0
    %85 = vmatprep.subr.bf16.mxu0 0
    %86 = vmatpush1.bf16.msra.mxu0 0
    %87 = vmatprep.subr.bf16.mxu0 0
    %88 = vmatpush1.bf16.msra.mxu0 0
    %89 = vmatprep.subr.bf16.mxu0 0
    %90 = vmatpush1.bf16.msra.mxu0 0
    %91 = vmatprep.mubr.bf16.mxu0 0
    %92 = vmatmul.mubr.bf16.gmra.mrb[0].mxu0 %v53
    %v93 = vpop.f32.mrb[0].mxu0
    %v94 = vadd.f32 0.0, %v93
    %v95 = vpop.f32.mrb[0].mxu0
    %v96 = vpop.f32.mrb[0].mxu0
    %v97 = vadd.f32 0.0, %v96
    %v98 = vpop.f32.mrb[0].mxu0
    %99 = vdwg.mxu0
    %v102 = vunpack.c.l.b16 %v48
    %v103 = vunpack.c.l.b16 %v49
    %v104 = vpack.c.b16 %v103, %v102
    %vm106 = vcmask 130048
    %v108 = vsel %vm106, %v32, 0
    %110 = vmatprep.subr.bf16.mxu0 0
    %111 = vmatpush1.bf16.msra.mxu0 %v104
    %112 = vmatprep.subr.bf16.mxu0 0
    %113 = vmatpush1.bf16.msra.mxu0 0
    %114 = vmatprep.subr.bf16.mxu0 0
    %115 = vmatpush1.bf16.msra.mxu0 0
    %116 = vmatprep.subr.bf16.mxu0 0
    %117 = vmatpush1.bf16.msra.mxu0 0
    %118 = vmatprep.subr.bf16.mxu0 0
    %119 = vmatpush1.bf16.msra.mxu0 0
    %120 = vmatprep.subr.bf16.mxu0 0
    %121 = vmatpush1.bf16.msra.mxu0 0
    %122 = vmatprep.subr.bf16.mxu0 0
    %123 = vmatpush1.bf16.msra.mxu0 0
    %124 = vmatprep.subr.bf16.mxu0 0
    %125 = vmatpush1.bf16.msra.mxu0 0
    %126 = vmatprep.subr.bf16.mxu0 0
    %127 = vmatpush1.bf16.msra.mxu0 0
    %128 = vmatprep.subr.bf16.mxu0 0
    %129 = vmatpush1.bf16.msra.mxu0 0
    %130 = vmatprep.subr.bf16.mxu0 0
    %131 = vmatpush1.bf16.msra.mxu0 0
    %132 = vmatprep.subr.bf16.mxu0 0
    %133 = vmatpush1.bf16.msra.mxu0 0
    %134 = vmatprep.subr.bf16.mxu0 0
    %135 = vmatpush1.bf16.msra.mxu0 0
    %136 = vmatprep.subr.bf16.mxu0 0
    %137 = vmatpush1.bf16.msra.mxu0 0
    %138 = vmatprep.subr.bf16.mxu0 0
    %139 = vmatpush1.bf16.msra.mxu0 0
    %140 = vmatprep.subr.bf16.mxu0 0
    %141 = vmatpush1.bf16.msra.mxu0 0
    %142 = vmatprep.mubr.bf16.mxu0 0
    %143 = vmatmul.mubr.bf16.gmra.mrb[0].mxu0 %v108
    %v144 = vpop.f32.mrb[0].mxu0
    %v145 = vadd.f32 %v94, %v144
    %v146 = vpop.f32.mrb[0].mxu0
    %v147 = vpop.f32.mrb[0].mxu0
    %v148 = vadd.f32 %v97, %v147
    %v149 = vpop.f32.mrb[0].mxu0
    %150 = vdwg.mxu0
    %v151 = vpack.c.bf16 %v148, %v145
    %v153 = vunpack.c.l.b16 %v151
    %v154 = vunpack.c.h.b16 %v151
    %v155 = vpack.c.b16 %v153, %v153
    %v156 = vpack.c.b16 %v154, %v154
    %159 = vst [vmem:[#allocation2] sm:$0xf] %v155
    %160 = vst [vmem:[#allocation2 + $0x4] sm:$0xf] %v156
    // Predicated region
    $region14: #{tpu_custom_call.1} parent=1 // pred_check
      _
    $region15: #{tpu_custom_call.1} parent=1 // pred_check_branch
      %162 = sbr.rel (0) target = $region17
    $region16: #{tpu_custom_call.1} parent=1 // pred_region
      %s164 = ssub.s32 128, 128
      %165 = vsyncadd [#allocation3], %s164
      %s166 = sshll.u32 [#allocation2], 4
      %s167 = int_to_ptr.vmem [resolvable:$true] %s166
      %172 = dma.vmem_to_hbm [thread:$0]  %s167, 128, %s3, [#allocation3], 64, 64, 4
    $region17: #{tpu_custom_call.1} parent=1 // pred_fallthru
      _
    // Predicated region
    $region18: #{tpu_custom_call.1} parent=1 // pred_check
      _
    $region19: #{tpu_custom_call.1} parent=1 // pred_check_branch
      %174 = sbr.rel (0) target = $region21
    $region20: #{tpu_custom_call.1} parent=1 // pred_region
      %175 = dma.done [#allocation3], 128
    $region21: #{tpu_custom_call.1} parent=1 // pred_fallthru
      _
    %176 = vsyncpa [#allocation3], 1

</llo_original>
